<compile_context>
chip_gen: v7x
topology: tpu7x:2x2x1
jax: 0.10.0
libtpu: 0.0.40
codegen_flags: <defaults>
</compile_context>

<pallas_src>
import jax
import jax.numpy as jnp
from jax.experimental import pallas as pl
from jax.experimental.pallas import tpu as pltpu

_LANE = 128
_TB_CAP = 8192                      # max rows per grid step
_VMEM_BUDGET = 24 * 1024 * 1024     # headroom under the 32 MiB scoped limit


def _round_up(n: int, m: int) -> int:
    return ((n + m - 1) // m) * m


def _choose_tile(n_rows: int, n_cols: int) -> int:
    """Rows per grid step, sized against the lane-padded, double-buffered VMEM
    footprint of the x tile plus the output tile (both f32)."""
    lanes = _round_up(n_cols, _LANE)
    bytes_per_row = 2 * (lanes + _LANE) * 4          # 2 bufs * (x row + out row)
    budget_rows = max(_VMEM_BUDGET // bytes_per_row, 8)
    if n_rows <= min(budget_rows, 1024):
        return n_rows                                # single block, exact fit
    tb = min(_TB_CAP, (budget_rows // 256) * 256)
    # keep >= ~4 grid steps so both of v7x's TensorCores get work
    tb = min(tb, _round_up(pl.cdiv(n_rows, 4), 256))
    return max(min(tb, n_rows), 8)


def _logreg_kernel(x_ref, w_ref, b_ref, o_ref):
    # x_ref: (TB, Dp) streamed VMEM tile; w_ref: (Dp, P) resident VMEM;
    # b_ref: (1, 1) SMEM scalar; o_ref: (TB, P) output tile.
    z = jnp.dot(x_ref[...], w_ref[...], preferred_element_type=jnp.float32)
    z = z + b_ref[0, 0]
    # sigmoid exactly as the PyTorch module writes it: 1 / (1 + exp(-z)).
    o_ref[...] = (1.0 / (1.0 + jnp.exp(-z))).astype(o_ref.dtype)


@jax.jit
def logistic_regression(x, w, b):
    """Forward pass of the PyTorch LogisticRegression module.

    x: (B, D) f32, w: (D, 1) f32, b: (1, 1) f32  ->  (B, 1) f32.
    """
    B, D = x.shape
    assert w.shape == (D, 1), w.shape
    assert b.shape == (1, 1), b.shape

    # Lane-pack the small feature dimension when the shapes allow it.
    if D < _LANE and _LANE % D == 0 and B % (_LANE // D) == 0:
        P = _LANE // D                               # original rows per packed row
        x2 = x.reshape(B // P, _LANE)                # layout-only (contiguous rows)
        w2 = (jnp.eye(P, dtype=w.dtype)[:, None, :]
              * w.reshape(D)[None, :, None]).reshape(_LANE, P)  # block-diag weights
    else:
        P = 1
        x2 = x
        w2 = w

    n_rows, n_cols = x2.shape
    tb = _choose_tile(n_rows, n_cols)
    grid = (pl.cdiv(n_rows, tb),)

    out2 = pl.pallas_call(
        _logreg_kernel,
        out_shape=jax.ShapeDtypeStruct((n_rows, P), jnp.float32),
        grid_spec=pltpu.PrefetchScalarGridSpec(
            num_scalar_prefetch=0,
            grid=grid,
            in_specs=[
                pl.BlockSpec((tb, n_cols), lambda i: (i, 0)),        # streamed x
                pl.BlockSpec((n_cols, P), lambda i: (0, 0)),         # resident w
                pl.BlockSpec(memory_space=pltpu.MemorySpace.SMEM),   # bias scalar
            ],
            out_specs=pl.BlockSpec((tb, P), lambda i: (i, 0)),
        ),
        compiler_params=pltpu.CompilerParams(
            dimension_semantics=("parallel",),       # v7x: shard batch over 2 TCs
            vmem_limit_bytes=32 * 1024 * 1024,       # v5e default is only 16 MiB
        ),
        cost_estimate=pl.CostEstimate(
            flops=2 * B * D,
            transcendentals=2 * B,
            bytes_accessed=(B * D + D) * 4 + (B + 1) * 4,
        ),
    )(x2, w2, b.astype(jnp.float32))

    # Back to the PyTorch output shape (B, 1); row order is preserved by the
    # packing (original row r*P + q maps to out2[r, q]).
    return out2.reshape(B, 1)


def _reference(x, w, b):
    z = jnp.dot(x, w, precision=jax.lax.Precision.HIGHEST) + b
    return 1.0 / (1.0 + jnp.exp(-z))


if __name__ == "__main__":
    key = jax.random.PRNGKey(0)
    kx, kw, kb = jax.random.split(key, 3)

    batch = 8
    n_inputs = 32                      # INPUT_LAYER_SIZE

    # Deterministic synthetic inputs / parameters (torch.randn equivalents).
    x = jax.random.normal(kx, (batch, n_inputs), dtype=jnp.float32)
    w = jax.random.normal(kw, (n_inputs, 1), dtype=jnp.float32)
    b = jax.random.normal(kb, (1, 1), dtype=jnp.float32)

    out = jax.block_until_ready(logistic_regression(x, w, b))
    ref = _reference(x, w, b)
    assert out.shape == (batch, 1)
    assert jnp.allclose(out, ref, atol=1e-3, rtol=1e-3), "mismatch vs reference"

    # Extra checks: multi-step grid with a ragged final block (packed path) and
    # the non-packable fallback path.  Padded rows never reach valid output.
    for bsz in (4500, 7):
        kx2 = jax.random.fold_in(kx, bsz)
        x_big = jax.random.normal(kx2, (bsz, n_inputs), dtype=jnp.float32)
        o_big = jax.block_until_ready(logistic_regression(x_big, w, b))
        r_big = _reference(x_big, w, b)
        assert o_big.shape == (bsz, 1)
        assert jnp.allclose(o_big, r_big, atol=1e-3, rtol=1e-3), f"mismatch B={bsz}"

    print("KERNEL_OK")
</pallas_src>

<mosaic_0001>
module attributes {stable_mosaic.version = 11 : i64} {
  func.func @_logreg_kernel(%arg0: i32, %arg1: memref<2x128xf32, #tpu.memory_space<vmem>>, %arg2: memref<128x4xf32, #tpu.memory_space<vmem>>, %arg3: memref<1x1xf32, #tpu.memory_space<smem>>, %arg4: memref<2x4xf32, #tpu.memory_space<vmem>>) attributes {dimension_semantics = [#tpu.dimension_semantics<parallel>], iteration_bounds = array<i64: 1>, scalar_prefetch = 0 : i64, scratch_operands = 0 : i64, tpu.core_type = #tpu.core_type<tc>, window_params = [{transform_indices = @transform_0, window_bounds = array<i64: 2, 128>}, {pipeline_mode = #tpu.pipeline_mode<synchronous>, transform_indices = @transform_1, window_bounds = array<i64: 128, 4>}, {transform_indices = @transform_2, window_bounds = array<i64: 1, 1>}, {transform_indices = @transform_3, window_bounds = array<i64: 2, 4>}]} {
    %c0 = arith.constant 0 : index
    %c0_0 = arith.constant 0 : index
    %0 = vector.load %arg1[%c0, %c0_0] : memref<2x128xf32, #tpu.memory_space<vmem>>, vector<2x128xf32>
    %c0_1 = arith.constant 0 : index
    %c0_2 = arith.constant 0 : index
    %1 = vector.load %arg2[%c0_1, %c0_2] : memref<128x4xf32, #tpu.memory_space<vmem>>, vector<128x4xf32>
    %cst = arith.constant dense<0.000000e+00> : vector<2x4xf32>
    %2 = tpu.matmul %0, %1, %cst {dimension_numbers = #tpu.dot_dimension_numbers<[1], [0], [0], [1], [0, 0, 1, 1], [], []>} : vector<2x128xf32>, vector<128x4xf32>, vector<2x4xf32> -> vector<2x4xf32>
    %c0_3 = arith.constant 0 : index
    %c0_4 = arith.constant 0 : index
    %3 = memref.load %arg3[%c0_3, %c0_4] : memref<1x1xf32, #tpu.memory_space<smem>>
    %4 = vector.broadcast %3 : f32 to vector<2x4xf32>
    %5 = arith.addf %2, %4 : vector<2x4xf32>
    %cst_5 = arith.constant 0.000000e+00 : f32
    %6 = vector.broadcast %cst_5 : f32 to vector<2x4xf32>
    %7 = arith.subf %6, %5 : vector<2x4xf32>
    %8 = math.exp %7 : vector<2x4xf32>
    %cst_6 = arith.constant 1.000000e+00 : f32
    %9 = vector.broadcast %cst_6 : f32 to vector<2x4xf32>
    %10 = arith.addf %9, %8 : vector<2x4xf32>
    %cst_7 = arith.constant 1.000000e+00 : f32
    %11 = vector.broadcast %cst_7 : f32 to vector<2x4xf32>
    %12 = arith.divf %11, %10 : vector<2x4xf32>
    %c0_8 = arith.constant 0 : index
    %c0_9 = arith.constant 0 : index
    %13 = vector.load %arg4[%c0_8, %c0_9] : memref<2x4xf32, #tpu.memory_space<vmem>>, vector<2x4xf32>
    tpu.vector_store %arg4[%c0_8, %c0_9], %12 {strides = array<i32>} : memref<2x4xf32, #tpu.memory_space<vmem>>, vector<2x4xf32>,
    return
  }
  func.func @transform_0(%arg0: i32) -> (i32, i32) {
    %c0_i32 = arith.constant 0 : i32
    %c0_i32_0 = arith.constant 0 : i32
    return %arg0, %c0_i32 : i32, i32
  }
  func.func @transform_1(%arg0: i32) -> (i32, i32) {
    %c0_i32 = arith.constant 0 : i32
    %c0_i32_0 = arith.constant 0 : i32
    %c0_i32_1 = arith.constant 0 : i32
    return %c0_i32, %c0_i32_0 : i32, i32
  }
  func.func @transform_2(%arg0: i32) -> (i32, i32) {
    %c0_i32 = arith.constant 0 : i32
    %c0_i32_0 = arith.constant 0 : i32
    %c0_i32_1 = arith.constant 0 : i32
    return %c0_i32, %c0_i32_0 : i32, i32
  }
  func.func @transform_3(%arg0: i32) -> (i32, i32) {
    %c0_i32 = arith.constant 0 : i32
    %c0_i32_0 = arith.constant 0 : i32
    return %arg0, %c0_i32 : i32, i32
  }
}

</mosaic_0001>

<llo_original>
// kernel: logistic_regression.1
$region0: #{logistic_regression.1}
  #allocation0 [shape = 'u32[]', space=smem, size = 0x4, offset = 0x4, fixed_abs, tag = 'smem constant byte address 0x4 - core index']
  #allocation1 [shape = 'u32[144,128]{1,0:T(1,128)}', space=vmem, size = 0x12000, scoped, tag = 'internal scratch']
  #allocation2 [shape = 'f32[1,1]{1,0:T(1,128)S(6)}', space=smem, size = 0x200, scoped, tag = 'scoped memory for logistic_regression.1']
  %s0 = inlined_call_operand.vmem [shape: f32[2,128], index: 0, kind: input, shape index: {}]
  %s1 = inlined_call_operand.vmem [shape: f32[128,4], index: 1, kind: input, shape index: {}]
  %s2 = inlined_call_operand.<no memory space> [shape: f32[1,1], index: 2, kind: input, shape index: {}]
  %s3 = inlined_call_operand.vmem [shape: f32[2,4], index: 3, kind: output, shape index: {}]
  %s4 = sld [smem:[#allocation0]]
  $region22: #{logistic_regression.1} parent=0
    _
  %s6 = ssub.s32 1, %s4
  %s7 = scalar_select 0, %s6, %s4
  %8 = sst [smem:[#allocation2]] %s2
  // Predicated region
  $region2: #{logistic_regression.1} parent=0 // pred_check
    _
  $region3: #{logistic_regression.1} parent=0 // pred_check_branch
    %10 = sbr.rel (0) target = $region5
  $region4: #{logistic_regression.1} parent=0 // pred_region
    _
  $region5: #{logistic_regression.1} parent=0 // pred_fallthru
    _
  // Predicated region
  $region6: #{logistic_regression.1} parent=0 // pred_check
    _
  $region7: #{logistic_regression.1} parent=0 // pred_check_branch
    %12 = sbr.rel (0) target = $region9
  $region8: #{logistic_regression.1} parent=0 // pred_region
    _
  $region9: #{logistic_regression.1} parent=0 // pred_fallthru
    _
  // Predicated region
  $region10: #{logistic_regression.1} parent=0 // pred_check
    _
  $region11: #{logistic_regression.1} parent=0 // pred_check_branch
    %14 = sbr.rel (0) target = $region13
  $region12: #{logistic_regression.1} parent=0 // pred_region
    _
  $region13: #{logistic_regression.1} parent=0 // pred_fallthru
    _
  %v15 = vld [vmem:[%s0] sm:$0x3]
  %v16 = vld [vmem:[%s1] sm:$0xff]
  %v17 = vld [vmem:[%s1 + $0x8] sm:$0xff]
  %v18 = vld [vmem:[%s1 + $0x10] sm:$0xff]
  %v19 = vld [vmem:[%s1 + $0x18] sm:$0xff]
  %v20 = vld [vmem:[%s1 + $0x20] sm:$0xff]
  %v21 = vld [vmem:[%s1 + $0x28] sm:$0xff]
  %v22 = vld [vmem:[%s1 + $0x30] sm:$0xff]
  %v23 = vld [vmem:[%s1 + $0x38] sm:$0xff]
  %v24 = vld [vmem:[%s1 + $0x40] sm:$0xff]
  %v25 = vld [vmem:[%s1 + $0x48] sm:$0xff]
  %v26 = vld [vmem:[%s1 + $0x50] sm:$0xff]
  %v27 = vld [vmem:[%s1 + $0x58] sm:$0xff]
  %v28 = vld [vmem:[%s1 + $0x60] sm:$0xff]
  %v29 = vld [vmem:[%s1 + $0x68] sm:$0xff]
  %v30 = vld [vmem:[%s1 + $0x70] sm:$0xff]
  %v31 = vld [vmem:[%s1 + $0x78] sm:$0xff]
  %s32 = sld [smem:[#allocation2]]
  %v33 = vstv %s32
  %34 = vmatprep.subr.mxu0 0.0
  %35 = vmatpush1.msra.mxu0 %v16
  %36 = vmatprep.subr.mxu0 0.0
  %37 = vmatpush1.msra.mxu0 %v17
  %38 = vmatprep.subr.mxu0 0.0
  %39 = vmatpush1.msra.mxu0 %v18
  %40 = vmatprep.subr.mxu0 0.0
  %41 = vmatpush1.msra.mxu0 %v19
  %42 = vmatprep.subr.mxu0 0.0
  %43 = vmatpush1.msra.mxu0 %v20
  %44 = vmatprep.subr.mxu0 0.0
  %45 = vmatpush1.msra.mxu0 %v21
  %46 = vmatprep.subr.mxu0 0.0
  %47 = vmatpush1.msra.mxu0 %v22
  %48 = vmatprep.subr.mxu0 0.0
  %49 = vmatpush1.msra.mxu0 %v23
  %50 = vmatprep.subr.mxu0 0.0
  %51 = vmatpush1.msra.mxu0 %v24
  %52 = vmatprep.subr.mxu0 0.0
  %53 = vmatpush1.msra.mxu0 %v25
  %54 = vmatprep.subr.mxu0 0.0
  %55 = vmatpush1.msra.mxu0 %v26
  %56 = vmatprep.subr.mxu0 0.0
  %57 = vmatpush1.msra.mxu0 %v27
  %58 = vmatprep.subr.mxu0 0.0
  %59 = vmatpush1.msra.mxu0 %v28
  %60 = vmatprep.subr.mxu0 0.0
  %61 = vmatpush1.msra.mxu0 %v29
  %62 = vmatprep.subr.mxu0 0.0
  %63 = vmatpush1.msra.mxu0 %v30
  %64 = vmatprep.subr.mxu0 0.0
  %65 = vmatpush1.msra.mxu0 %v31
  %66 = vmatprep.subr.mxu0 0.0
  %67 = vmatpush1.msra.mxu0 0.0
  %68 = vmatprep.subr.mxu0 0.0
  %69 = vmatpush1.msra.mxu0 0.0
  %70 = vmatprep.subr.mxu0 0.0
  %71 = vmatpush1.msra.mxu0 0.0
  %72 = vmatprep.subr.mxu0 0.0
  %73 = vmatpush1.msra.mxu0 0.0
  %74 = vmatprep.subr.mxu0 0.0
  %75 = vmatpush1.msra.mxu0 0.0
  %76 = vmatprep.subr.mxu0 0.0
  %77 = vmatpush1.msra.mxu0 0.0
  %78 = vmatprep.subr.mxu0 0.0
  %79 = vmatpush1.msra.mxu0 0.0
  %80 = vmatprep.subr.mxu0 0.0
  %81 = vmatpush1.msra.mxu0 0.0
  %82 = vmatprep.subr.mxu0 0.0
  %83 = vmatpush1.msra.mxu0 0.0
  %84 = vmatprep.subr.mxu0 0.0
  %85 = vmatpush1.msra.mxu0 0.0
  %86 = vmatprep.subr.mxu0 0.0
  %87 = vmatpush1.msra.mxu0 0.0
  %88 = vmatprep.subr.mxu0 0.0
  %89 = vmatpush1.msra.mxu0 0.0
  %90 = vmatprep.subr.mxu0 0.0
  %91 = vmatpush1.msra.mxu0 0.0
  %92 = vmatprep.subr.mxu0 0.0
  %93 = vmatpush1.msra.mxu0 0.0
  %94 = vmatprep.subr.mxu0 0.0
  %95 = vmatpush1.msra.mxu0 0.0
  %96 = vmatprep.subr.mxu0 0.0
  %97 = vmatpush1.msra.mxu0 0.0
  %98 = vmatprep.mubr.f32.mxu0 0.0
  %99 = vmatmul.mubr.f32.gmra.mrb[0].mxu0 %v15
  %v100 = vpop.f32.mrb[0].mxu0
  %v101 = vadd.f32 %v33, %v100
  %v102 = vpop.f32.mrb[0].mxu0
  %103 = vdwg.mxu0
  %v104 = vsub.f32 0.0, %v101
  %v105 = vmul.f32 %v104, 1.442695
  %v106 = vpow.pop %v105
  %v107 = vadd.f32 %v106, 1.0
  %v108 = vrcp.pop %v107
  %v109 = vmul.f32 1.0, %v108
  %vm110 = vcmask 25600
  %111 = vst.msk [vmem:[%s3] sm:$0x3] %vm110, %v109
  // Predicated region
  $region14: #{logistic_regression.1} parent=0 // pred_check
    _
  $region15: #{logistic_regression.1} parent=0 // pred_check_branch
    %113 = sbr.rel (0) target = $region17
  $region16: #{logistic_regression.1} parent=0 // pred_region
    _
  $region17: #{logistic_regression.1} parent=0 // pred_fallthru
    _
  // Predicated region
  $region18: #{logistic_regression.1} parent=0 // pred_check
    _
  $region19: #{logistic_regression.1} parent=0 // pred_check_branch
    %115 = sbr.rel (0) target = $region21
  $region20: #{logistic_regression.1} parent=0 // pred_region
    _
  $region21: #{logistic_regression.1} parent=0 // pred_fallthru
    _

</llo_original>
